<compile_context>
chip_gen: v7x
topology: tpu7x:2x2x1
jax: 0.10.0
libtpu: 0.0.40
codegen_flags: <defaults>
</compile_context>

<pallas_src>
import jax
import jax.numpy as jnp
from jax.experimental import pallas as pl
from jax.experimental.pallas import tpu as pltpu


def qnet_kernel(qparams_ref, x_ref, w_ref, b_ref, o_ref):
    # qparams (SMEM): [inv_s_x, zp_x, s_out]
    inv_s_x = qparams_ref[0]
    zp_x = qparams_ref[1]
    s_out = qparams_ref[2]

    x = x_ref[...]                                            # (C_in, t_hw) f32
    # QuantStub: static per-tensor affine int8 quantization (emulated).
    # Reciprocal multiply instead of a per-element divide.
    q = jnp.clip(jnp.round(x * inv_s_x) + zp_x, -128.0, 127.0)
    # Quantized 1x1 conv as a channel matmul.  Both operands are
    # integer-valued (|v| <= 128) so bf16 represents them exactly; the MXU
    # accumulates in f32 -> exact int8 accumulate, scaled once in the epilogue
    # (matches real int8-backend rounding, unlike folding s_out per-product).
    acc = jnp.dot(w_ref[...], q.astype(jnp.bfloat16),
                  preferred_element_type=jnp.float32)         # (C_out, t_hw)
    # DeQuantStub (single scale) + folded bias + ReLU.  Last dim t_hw is a
    # multiple of 128 (or the full HW) -> lane-dense stores.
    o_ref[...] = jnp.maximum(acc * s_out + b_ref[...], 0.0).astype(o_ref.dtype)


def calibrate_quant_params(x_calib, w, eps=1e-8):
    """One-off calibration (NOT part of the forward hot path), mirroring the
    static QuantStub/observer workflow: fixed per-tensor scale / zero-point."""
    x_min = jnp.min(x_calib)
    x_max = jnp.max(x_calib)
    s_x = jnp.maximum((x_max - x_min) / 255.0, eps)        # eps guards constant input
    # Clamp zero-point to the valid int8 range so it round-trips to a real backend.
    zp_x = jnp.clip(jnp.round(-x_min / s_x) - 128.0, -128.0, 127.0)
    s_w = jnp.maximum(jnp.max(jnp.abs(w)) / 127.0, eps)
    return s_x.astype(jnp.float32), zp_x.astype(jnp.float32), s_w.astype(jnp.float32)


def prepare_quantized_weights(w, b, qparams):
    """Quantize the 1x1-conv weight once; fold the zero-point into the bias.
    The output scale s_out stays a scalar applied in the kernel epilogue."""
    s_x, zp_x, s_w = qparams
    C_in, C_out = w.shape
    wq = jnp.clip(jnp.round(w / s_w), -127.0, 127.0)          # int8-valued f32
    s_out = s_x * s_w
    wq_t = wq.T.astype(jnp.bfloat16)                          # (C_out, C_in), exact in bf16
    b_eff = (b - s_out * zp_x * jnp.sum(wq, axis=0))          # (C_out,)
    b_eff = b_eff.reshape(C_out, 1).astype(jnp.float32)
    qvec = jnp.stack([1.0 / s_x, zp_x, s_out]).astype(jnp.float32)   # (3,) -> SMEM
    return wq_t, b_eff, qvec


def _largest_tile(HW, max_tile=65536):
    """Largest legal spatial tile: HW itself if it already fits, otherwise the
    largest multiple-of-128 divisor of HW that is <= max_tile (the block's
    last dim must be a multiple of 128 or the full dim)."""
    if HW <= max_tile:
        return HW
    cap = (max_tile // 128) * 128
    for cand in range(cap, 0, -128):
        if HW % cand == 0:
            return cand
    # TODO(synk): HW has no multiple-of-128 divisor <= max_tile; fall back to a
    # single full-HW tile (correct, but pad-the-last-tile would be better).
    return HW


def quantized_net_forward(x_nchw, wq_t, b_eff, qvec, *, t_hw=None,
                          out_dtype=jnp.float32):
    """x_nchw: (N, C_in, H, W) fp32.  wq_t: (C_out, C_in) bf16 integer-valued.
    b_eff: (C_out, 1) fp32.  qvec: (3,) fp32 [inv_s_x, zp_x, s_out]."""
    N, C_in, H, W = x_nchw.shape
    C_out = wq_t.shape[0]
    HW = H * W

    # NCHW -> (N, C_in, H*W) is a pure view (no transpose / extra HBM traffic).
    x3d = x_nchw.reshape(N, C_in, HW)

    if t_hw is None:
        # Mem-bound kernel: want >= ~1-2 MiB of HBM traffic per grid step so
        # the ~0.35us per-step overhead and short DMA bursts don't dominate.
        t_hw = _largest_tile(HW, max_tile=65536)
    assert HW % t_hw == 0 and (t_hw == HW or t_hw % 128 == 0)

    # v7x has 2 TensorCores sharing HBM: ensure the 'parallel' grid has >=2
    # steps even when N == 1 and one tile covers all of HW.
    if N * (HW // t_hw) < 2 and t_hw % 256 == 0:
        t_hw //= 2

    n_tiles = HW // t_hw
    grid = (N, n_tiles)

    out_itemsize = jnp.dtype(out_dtype).itemsize
    # Double-buffered per-step VMEM footprint (inputs + outputs) plus slack;
    # stay under v7x's 64 MiB physical VMEM, only exceed the 32 MiB default
    # scoped limit when the tile actually requires it.
    blk_bytes = 2 * (C_in * t_hw * 4 + C_out * t_hw * out_itemsize)
    vmem_limit = int(min(max(blk_bytes + (4 << 20), 32 << 20), 60 << 20))

    cost = pl.CostEstimate(
        flops=2 * N * HW * C_in * C_out,
        transcendentals=0,
        bytes_accessed=int(N * HW * (C_in * 4 + C_out * out_itemsize)
                           + wq_t.size * 2 + b_eff.size * 4 + qvec.size * 4),
    )

    out3d = pl.pallas_call(
        qnet_kernel,
        out_shape=jax.ShapeDtypeStruct((N, C_out, HW), out_dtype),
        grid_spec=pltpu.PrefetchScalarGridSpec(
            num_scalar_prefetch=0,
            grid=grid,
            in_specs=[
                pl.BlockSpec(memory_space=pltpu.MemorySpace.SMEM),          # qparams
                pl.BlockSpec((None, C_in, t_hw), lambda n, s: (n, 0, s)),   # x block
                pl.BlockSpec((C_out, C_in), lambda n, s: (0, 0)),           # wq (bf16)
                pl.BlockSpec((C_out, 1), lambda n, s: (0, 0)),              # folded bias
            ],
            out_specs=pl.BlockSpec((None, C_out, t_hw), lambda n, s: (n, 0, s)),
        ),
        compiler_params=pltpu.CompilerParams(
            dimension_semantics=("parallel", "parallel"),
            vmem_limit_bytes=vmem_limit),
        cost_estimate=cost,
    )(qvec, x3d, wq_t, b_eff)

    return out3d.reshape(N, C_out, H, W)


if __name__ == "__main__":
    key = jax.random.PRNGKey(0)
    kx, kw, kb = jax.random.split(key, 3)

    N, C_in, H, W = 2, 4, 16, 16
    C_out = 8

    x = jax.random.normal(kx, (N, C_in, H, W), dtype=jnp.float32)
    w = jax.random.normal(kw, (C_in, C_out), dtype=jnp.float32) * 0.1   # 1x1 conv weight
    b = jax.random.normal(kb, (C_out,), dtype=jnp.float32) * 0.1

    # Static quantization: calibrate and fold once, outside the forward pass.
    qparams = calibrate_quant_params(x, w)
    wq_t, b_eff, qvec = prepare_quantized_weights(w, b, qparams)

    out = quantized_net_forward(x, wq_t, b_eff, qvec)
    out = jax.block_until_ready(out)

    # Pure-JAX reference: textbook static int8 fake-quant 1x1 conv + ReLU (NCHW).
    s_x, zp_x, s_w = qparams
    s_out = s_x * s_w
    wq = jnp.clip(jnp.round(w / s_w), -127.0, 127.0)
    q = jnp.clip(jnp.round(x * (1.0 / s_x)) + zp_x, -128.0, 127.0)       # (N,C_in,H,W)
    acc = jnp.einsum('io,nihw->nohw', wq, q - zp_x)
    ref = jnp.maximum(acc * s_out + b.reshape(1, C_out, 1, 1), 0.0)
    assert jnp.allclose(out, ref, atol=1e-5, rtol=1e-5), "mismatch vs reference"

    print("KERNEL_OK")
</pallas_src>

<mosaic_0001>
module attributes {stable_mosaic.version = 11 : i64} {
  func.func @qnet_kernel(%arg0: i32, %arg1: i32, %arg2: memref<3xf32, #tpu.memory_space<smem>>, %arg3: memref<1x4x256xf32, #tpu.memory_space<vmem>>, %arg4: memref<8x4xbf16, #tpu.memory_space<vmem>>, %arg5: memref<8x1xf32, #tpu.memory_space<vmem>>, %arg6: memref<1x8x256xf32, #tpu.memory_space<vmem>>) attributes {dimension_semantics = [#tpu.dimension_semantics<parallel>, #tpu.dimension_semantics<parallel>], iteration_bounds = array<i64: 2, 1>, scalar_prefetch = 0 : i64, scratch_operands = 0 : i64, tpu.core_type = #tpu.core_type<tc>, window_params = [{transform_indices = @transform_0, window_bounds = array<i64: 3>}, {transform_indices = @transform_1, window_bounds = array<i64: 1, 4, 256>}, {pipeline_mode = #tpu.pipeline_mode<synchronous>, transform_indices = @transform_2, window_bounds = array<i64: 8, 4>}, {pipeline_mode = #tpu.pipeline_mode<synchronous>, transform_indices = @transform_3, window_bounds = array<i64: 8, 1>}, {transform_indices = @transform_4, window_bounds = array<i64: 1, 8, 256>}]} {
    %c0 = arith.constant 0 : index
    %0 = memref.load %arg2[%c0] : memref<3xf32, #tpu.memory_space<smem>>
    %c1 = arith.constant 1 : index
    %1 = memref.load %arg2[%c1] : memref<3xf32, #tpu.memory_space<smem>>
    %c2 = arith.constant 2 : index
    %2 = memref.load %arg2[%c2] : memref<3xf32, #tpu.memory_space<smem>>
    %c0_0 = arith.constant 0 : index
    %c0_1 = arith.constant 0 : index
    %c0_2 = arith.constant 0 : index
    %3 = vector.load %arg3[%c0_0, %c0_1, %c0_2] : memref<1x4x256xf32, #tpu.memory_space<vmem>>, vector<1x4x256xf32>
    %4 = vector.shape_cast %3 : vector<1x4x256xf32> to vector<4x256xf32>
    %5 = vector.broadcast %0 : f32 to vector<4x256xf32>
    %6 = arith.mulf %4, %5 : vector<4x256xf32>
    %7 = math.roundeven %6 : vector<4x256xf32>
    %8 = vector.broadcast %1 : f32 to vector<4x256xf32>
    %9 = arith.addf %7, %8 : vector<4x256xf32>
    %cst = arith.constant -1.280000e+02 : f32
    %cst_3 = arith.constant 1.270000e+02 : f32
    %10 = vector.broadcast %cst : f32 to vector<4x256xf32>
    %11 = arith.maximumf %10, %9 : vector<4x256xf32>
    %12 = vector.broadcast %cst_3 : f32 to vector<4x256xf32>
    %13 = arith.minimumf %12, %11 : vector<4x256xf32>
    %c0_4 = arith.constant 0 : index
    %c0_5 = arith.constant 0 : index
    %14 = vector.load %arg4[%c0_4, %c0_5] : memref<8x4xbf16, #tpu.memory_space<vmem>>, vector<8x4xbf16>
    %15 = arith.truncf %13 : vector<4x256xf32> to vector<4x256xbf16>
    %cst_6 = arith.constant dense<0.000000e+00> : vector<8x256xf32>
    %16 = tpu.matmul %14, %15, %cst_6 {dimension_numbers = #tpu.dot_dimension_numbers<[1], [0], [0], [1], [0, 0, 1, 1], [], []>} : vector<8x4xbf16>, vector<4x256xbf16>, vector<8x256xf32> -> vector<8x256xf32>
    %17 = vector.broadcast %2 : f32 to vector<8x256xf32>
    %18 = arith.mulf %16, %17 : vector<8x256xf32>
    %c0_7 = arith.constant 0 : index
    %c0_8 = arith.constant 0 : index
    %19 = vector.load %arg5[%c0_7, %c0_8] : memref<8x1xf32, #tpu.memory_space<vmem>>, vector<8x1xf32>
    %20 = vector.broadcast %19 : vector<8x1xf32> to vector<8x256xf32>
    %21 = arith.addf %18, %20 : vector<8x256xf32>
    %cst_9 = arith.constant 0.000000e+00 : f32
    %22 = vector.broadcast %cst_9 : f32 to vector<8x256xf32>
    %23 = arith.maximumf %21, %22 : vector<8x256xf32>
    %c0_10 = arith.constant 0 : index
    %c0_11 = arith.constant 0 : index
    %c0_12 = arith.constant 0 : index
    %24 = vector.load %arg6[%c0_10, %c0_11, %c0_12] : memref<1x8x256xf32, #tpu.memory_space<vmem>>, vector<1x8x256xf32>
    %25 = vector.shape_cast %24 : vector<1x8x256xf32> to vector<8x256xf32>
    %26 = vector.shape_cast %23 : vector<8x256xf32> to vector<1x8x256xf32>
    tpu.vector_store %arg6[%c0_10, %c0_11, %c0_12], %26 {strides = array<i32>} : memref<1x8x256xf32, #tpu.memory_space<vmem>>, vector<1x8x256xf32>,
    return
  }
  func.func @transform_0(%arg0: i32, %arg1: i32) -> i32 {
    %c0_i32 = arith.constant 0 : i32
    %c0_i32_0 = arith.constant 0 : i32
    return %c0_i32 : i32
  }
  func.func @transform_1(%arg0: i32, %arg1: i32) -> (i32, i32, i32) {
    %c0_i32 = arith.constant 0 : i32
    %c0_i32_0 = arith.constant 0 : i32
    return %arg0, %c0_i32, %arg1 : i32, i32, i32
  }
  func.func @transform_2(%arg0: i32, %arg1: i32) -> (i32, i32) {
    %c0_i32 = arith.constant 0 : i32
    %c0_i32_0 = arith.constant 0 : i32
    %c0_i32_1 = arith.constant 0 : i32
    return %c0_i32, %c0_i32_0 : i32, i32
  }
  func.func @transform_3(%arg0: i32, %arg1: i32) -> (i32, i32) {
    %c0_i32 = arith.constant 0 : i32
    %c0_i32_0 = arith.constant 0 : i32
    %c0_i32_1 = arith.constant 0 : i32
    return %c0_i32, %c0_i32_0 : i32, i32
  }
  func.func @transform_4(%arg0: i32, %arg1: i32) -> (i32, i32, i32) {
    %c0_i32 = arith.constant 0 : i32
    %c0_i32_0 = arith.constant 0 : i32
    return %arg0, %c0_i32, %arg1 : i32, i32, i32
  }
}

</mosaic_0001>

<llo_original>
// kernel: tpu_custom_call.1
$region0: #{tpu_custom_call.1}
  #allocation0 [shape = 'u32[]', space=smem, size = 0x4, offset = 0x4, fixed_abs, tag = 'smem constant byte address 0x4 - core index']
  #allocation1 [shape = 'u32[144,128]{1,0:T(1,128)}', space=vmem, size = 0x12000, scoped, tag = 'internal scratch']
  %s0 = inlined_call_operand.vmem [shape: f32[3], index: 0, kind: input, shape index: {}]
  %s1 = inlined_call_operand.vmem [shape: f32[2,4,256], index: 1, kind: input, shape index: {}]
  %s2 = inlined_call_operand.vmem [shape: bf16[8,4], index: 2, kind: input, shape index: {}]
  %s3 = inlined_call_operand.vmem [shape: f32[8,1], index: 3, kind: input, shape index: {}]
  %s4 = inlined_call_operand.hbm [shape: f32[2,8,256], index: 4, kind: output, shape index: {}]
  %s5 = sld [smem:[#allocation0]]
  $region53: #{tpu_custom_call.1} parent=0
    _
  %s7 = ssub.s32 1, %s5
  %s8 = scalar_select 0, %s7, %s5
  $region1: #{tpu_custom_call.1} parent=0
    #allocation2 [shape = 'u8[512]{0}', space=smem, size = 0x200, scoped, tag = 'input window, operand 0, single buffered']
    #allocation3 [shape = 's32[2]{0}', space=sflag, size = 0x8, scoped, tag = 'scoped memory for tpu_custom_call.1']
    #allocation4 [shape = 's32[2]{0}', space=sflag, size = 0x8, scoped, tag = 'scoped memory for tpu_custom_call.1']
    #allocation5 [shape = 'u8[16384]{0}', space=vmem, size = 0x4000, scoped, tag = 'output window, operand 0']
    %9 = vsyncpa [#allocation4], 0
    %10 = vsyncpa [#allocation3], 0
    %s11 = scalar_lea.sflag [#allocation3], 1
    %12 = vsyncpa %s11, 0
    loop: start=0, step=1, limit=4
    $region2: #{tpu_custom_call.1} parent=1 // loop_pre_header
      _
    $region3: #{tpu_custom_call.1} parent=1 // loop_header
      %s14 = sphi 0, %s18
      %p15 = scmp.ge.s32.totalorder %s14, 4
      %s21 = sphi 0, %s33
      %s22 = sphi 0, %s29
      %s23 = sphi 0, %s21
      %s24 = sphi 0, %s22
      %s25 = sphi 0, %s23
      %s26 = sphi 0, %s24
      %s34 = sphi 0, %s34
      %s36 = sphi 0, %s34
      %s37 = sphi 0, %s36
      %s51 = sphi 0, %s37
      %s59 = sphi 0, %s61
      %s62 = sphi 0, %s59
      %s63 = sphi 0, %s62
      %s79 = sphi 0, %s63
      %s83 = sphi 0, %s83
      %s85 = sphi 0, %s83
      %s86 = sphi 0, %s85
      %s100 = sphi 0, %s86
      %s104 = sphi 0, %s104
      %s106 = sphi 0, %s104
      %s107 = sphi 0, %s106
      %s121 = sphi 0, %s107
      %s129 = sphi 0, %s131
      %s132 = sphi 0, %s129
      %s133 = sphi 0, %s132
      %s149 = sphi 0, %s133
    $region4: #{tpu_custom_call.1} parent=1 // loop_header_branch
      %17 = sbr.rel (%p15) target = $region8
    $region5: #{tpu_custom_call.1} parent=1 // loop_body
      %s19 = ssub.s32 %s14, 1
      %s20 = ssub.s32 %s14, 2
      %s27 = sadd.s32 1, %s22
      %p28 = scmp.ge.s32.totalorder %s27, 1
      %s29 = scalar_select %p28, 0, %s27
      %s30 = sadd.s32 1, %s21
      %s31 = scalar_select %p28, %s30, %s21
      %p32 = scmp.ge.s32.totalorder %s31, 2
      %s33 = scalar_select %p32, 0, %s31
      %s35 = sadd.s32 %s34, 1
      %p38 = scmp.eq.s32.totalorder %s14, 1
      %p39 = scmp.ne.s32.totalorder %s34, %s36
      %p40 = scmp.eq.s32.totalorder %s14, 0
      %p41 = por %p39, %p40
      %p42 = scmp.ne.s32.totalorder %s34, %s36
      %p43 = scmp.eq.s32.totalorder %s19, 1
      %p44 = por %p42, %p43
      %p45 = scmp.ne.s32.totalorder %s36, %s37
      %p46 = scmp.eq.s32.totalorder %s19, 0
      %p47 = por %p45, %p46
      %p48 = scmp.ne.s32.totalorder %s36, %s37
      %p49 = scmp.eq.s32.totalorder %s20, 1
      %p50 = por %p48, %p49
      %p52 = scmp.ne.s32.totalorder %s37, %s51
      %p53 = scmp.eq.s32.totalorder %s20, 0
      %p54 = por %p52, %p53
      %s55 = ssub.s32 %s21, %s33
      %s56 = ssub.s32 %s22, %s29
      %s57 = sor.u32 %s55, %s56
      %p58 = scmp.eq.s32.totalorder %s57, 0
      %s60 = sadd.s32 %s59, 1
      %s61 = scalar_select %p58, %s59, %s60
      %p64 = pneg %p58
      %p65 = scmp.eq.s32.totalorder %s14, 1
      %p66 = por %p64, %p65
      %p67 = scmp.ne.s32.totalorder %s59, %s62
      %p68 = scmp.eq.s32.totalorder %s14, 0
      %p69 = por %p67, %p68
      %p70 = scmp.ne.s32.totalorder %s59, %s62
      %p71 = scmp.eq.s32.totalorder %s19, 1
      %p72 = por %p70, %p71
      %p73 = scmp.ne.s32.totalorder %s62, %s63
      %p74 = scmp.eq.s32.totalorder %s19, 0
      %p75 = por %p73, %p74
      %p76 = scmp.ne.s32.totalorder %s62, %s63
      %p77 = scmp.eq.s32.totalorder %s20, 1
      %p78 = por %p76, %p77
      %p80 = scmp.ne.s32.totalorder %s63, %s79
      %p81 = scmp.eq.s32.totalorder %s20, 0
      %p82 = por %p80, %p81
      %s84 = sadd.s32 %s83, 1
      %p87 = scmp.eq.s32.totalorder %s14, 1
      %p88 = scmp.ne.s32.totalorder %s83, %s85
      %p89 = scmp.eq.s32.totalorder %s14, 0
      %p90 = por %p88, %p89
      %p91 = scmp.ne.s32.totalorder %s83, %s85
      %p92 = scmp.eq.s32.totalorder %s19, 1
      %p93 = por %p91, %p92
      %p94 = scmp.ne.s32.totalorder %s85, %s86
      %p95 = scmp.eq.s32.totalorder %s19, 0
      %p96 = por %p94, %p95
      %p97 = scmp.ne.s32.totalorder %s85, %s86
      %p98 = scmp.eq.s32.totalorder %s20, 1
      %p99 = por %p97, %p98
      %p101 = scmp.ne.s32.totalorder %s86, %s100
      %p102 = scmp.eq.s32.totalorder %s20, 0
      %p103 = por %p101, %p102
      %s105 = sadd.s32 %s104, 1
      %p108 = scmp.eq.s32.totalorder %s14, 1
      %p109 = scmp.ne.s32.totalorder %s104, %s106
      %p110 = scmp.eq.s32.totalorder %s14, 0
      %p111 = por %p109, %p110
      %p112 = scmp.ne.s32.totalorder %s104, %s106
      %p113 = scmp.eq.s32.totalorder %s19, 1
      %p114 = por %p112, %p113
      %p115 = scmp.ne.s32.totalorder %s106, %s107
      %p116 = scmp.eq.s32.totalorder %s19, 0
      %p117 = por %p115, %p116
      %p118 = scmp.ne.s32.totalorder %s106, %s107
      %p119 = scmp.eq.s32.totalorder %s20, 1
      %p120 = por %p118, %p119
      %p122 = scmp.ne.s32.totalorder %s107, %s121
      %p123 = scmp.eq.s32.totalorder %s20, 0
      %p124 = por %p122, %p123
      %s125 = ssub.s32 %s21, %s33
      %s126 = ssub.s32 %s22, %s29
      %s127 = sor.u32 %s125, %s126
      %p128 = scmp.eq.s32.totalorder %s127, 0
      %s130 = sadd.s32 %s129, 1
      %s131 = scalar_select %p128, %s129, %s130
      %p134 = pneg %p128
      %p135 = scmp.eq.s32.totalorder %s14, 1
      %p136 = por %p134, %p135
      %p137 = scmp.ne.s32.totalorder %s129, %s132
      %p138 = scmp.eq.s32.totalorder %s14, 0
      %p139 = por %p137, %p138
      %p140 = scmp.ne.s32.totalorder %s129, %s132
      %p141 = scmp.eq.s32.totalorder %s19, 1
      %p142 = por %p140, %p141
      %p143 = scmp.ne.s32.totalorder %s132, %s133
      %p144 = scmp.eq.s32.totalorder %s19, 0
      %p145 = por %p143, %p144
      %p146 = scmp.ne.s32.totalorder %s132, %s133
      %p147 = scmp.eq.s32.totalorder %s20, 1
      %p148 = por %p146, %p147
      %p150 = scmp.ne.s32.totalorder %s133, %s149
      %p151 = scmp.eq.s32.totalorder %s20, 0
      %p152 = por %p150, %p151
      %p153 = scmp.le.s32.totalorder 1, %s14
      %p154 = scmp.lt.s32.totalorder %s14, 3
      %p155 = pnand %p153, %p154
      %p156 = pneg %p155
      // Predicated region
      $region9: #{tpu_custom_call.1} parent=5 // pred_check
        _
      $region10: #{tpu_custom_call.1} parent=5 // pred_check_branch
        %158 = sbr.rel (%p155) target = $region12
      $region11: #{tpu_custom_call.1} parent=5 // pred_region
        %s159 = ssub.s32 %s14, 1
        // Predicated region
        $region13: #{tpu_custom_call.1} parent=11 // pred_check
          %p160 = pneg %p47
        $region14: #{tpu_custom_call.1} parent=11 // pred_check_branch
          %162 = sbr.rel (%p160) target = $region16
        $region15: #{tpu_custom_call.1} parent=11 // pred_region
          %s164 = ssub.s32 16, 16
          %165 = vsyncadd [#allocation4], %s164
          %s167 = sshll.u32 %s0, 4
          %s168 = int_to_ptr.vmem [resolvable:$true] %s167
          %170 = dma.vmem_to_smem %s168, 16, [#allocation2], [#allocation4]
        $region16: #{tpu_custom_call.1} parent=11 // pred_fallthru
          _
        // Predicated region
        $region17: #{tpu_custom_call.1} parent=11 // pred_check
          %p171 = pneg %p96
        $region18: #{tpu_custom_call.1} parent=11 // pred_check_branch
          %173 = sbr.rel (%p171) target = $region20
        $region19: #{tpu_custom_call.1} parent=11 // pred_region
          _
        $region20: #{tpu_custom_call.1} parent=11 // pred_fallthru
          _
        // Predicated region
        $region21: #{tpu_custom_call.1} parent=11 // pred_check
          %p174 = pneg %p117
        $region22: #{tpu_custom_call.1} parent=11 // pred_check_branch
          %176 = sbr.rel (%p174) target = $region24
        $region23: #{tpu_custom_call.1} parent=11 // pred_region
          _
        $region24: #{tpu_custom_call.1} parent=11 // pred_fallthru
          _
      $region12: #{tpu_custom_call.1} parent=5 // pred_fallthru
        _
      %p177 = scmp.lt.s32.totalorder %s14, 2
      // Predicated region
      $region25: #{tpu_custom_call.1} parent=5 // pred_check
        %p178 = pneg %p177
      $region26: #{tpu_custom_call.1} parent=5 // pred_check_branch
        %180 = sbr.rel (%p178) target = $region28
      $region27: #{tpu_custom_call.1} parent=5 // pred_region
        // Predicated region
        $region29: #{tpu_custom_call.1} parent=27 // pred_check
          %p181 = pneg %p69
        $region30: #{tpu_custom_call.1} parent=27 // pred_check_branch
          %183 = sbr.rel (%p181) target = $region32
        $region31: #{tpu_custom_call.1} parent=27 // pred_region
          %s184 = smul.u32 2, %s22
          %p185 = scmp.lt.s32.totalorder %s21, 1
          %s186 = scalar_select %p185, %s21, 1
          %p187 = scmp.lt.s32.totalorder %s184, 1
          %s188 = scalar_select %p187, %s184, 1
          %s189 = smul.addr %s186, 2
          %s190 = sadd.s32 %s188, %s189
          %s191 = smul.addr %s190, 4
          %s192 = scalar_lea.vmem %s1, %s191
          %s193 = smul.u32 2, %s22
        $region32: #{tpu_custom_call.1} parent=27 // pred_fallthru
          _
      $region28: #{tpu_custom_call.1} parent=5 // pred_fallthru
        _
      %p194 = scmp.le.s32.totalorder 1, %s14
      %p195 = scmp.lt.s32.totalorder %s14, 3
      %p196 = pnand %p194, %p195
      %p197 = pneg %p196
      // Predicated region
      $region33: #{tpu_custom_call.1} parent=5 // pred_check
        _
      $region34: #{tpu_custom_call.1} parent=5 // pred_check_branch
        %199 = sbr.rel (%p196) target = $region36
      $region35: #{tpu_custom_call.1} parent=5 // pred_region
        %s200 = ssub.s32 %s14, 1
        // Predicated region
        $region37: #{tpu_custom_call.1} parent=35 // pred_check
          %p201 = pneg %p47
        $region38: #{tpu_custom_call.1} parent=35 // pred_check_branch
          %203 = sbr.rel (%p201) target = $region40
        $region39: #{tpu_custom_call.1} parent=35 // pred_region
          %204 = dma.done [#allocation4], 16
        $region40: #{tpu_custom_call.1} parent=35 // pred_fallthru
          _
        %205 = sfence
        %p206 = pneg %p47
        %p207 = pneg %p44
        %s208 = smul.u32 2, %s24
        %p209 = scmp.lt.s32.totalorder %s23, 1
        %s210 = scalar_select %p209, %s23, 1
        %p211 = scmp.lt.s32.totalorder %s208, 1
        %s212 = scalar_select %p211, %s208, 1
        %s213 = smul.addr %s210, 2
        %s214 = sadd.s32 %s212, %s213
        %s215 = smul.addr %s214, 4
        %s216 = scalar_lea.vmem %s1, %s215
        %p217 = pneg %p75
        %p218 = pneg %p72
        %p219 = pneg %p96
        %p220 = pneg %p93
        %p221 = pneg %p117
        %p222 = pneg %p114
        %p223 = pneg %p145
        %p224 = pneg %p142
        %s225 = sand.u32 %s132, 1
        %s226 = scalar_lea.sflag [#allocation3], %s225
        %s227 = sand.u32 %s132, 1
        %s228 = smul.addr %s227, 16
        %s229 = scalar_lea.vmem [#allocation5], %s228
        %s230 = smul.u32 2, %s24
        %p231 = scmp.lt.s32.totalorder %s23, 1
        %s232 = scalar_select %p231, %s23, 1
        %p233 = scmp.lt.s32.totalorder %s230, 1
        %s234 = scalar_select %p233, %s230, 1
        %s235 = smul.addr %s232, 2
        %s236 = sadd.s32 %s234, %s235
        %s237 = smul.addr %s236, 4
        %s238 = scalar_lea.vmem %s1, %s237
        %s239 = smul.u32 2, %s24
        %s240 = smul.u32 2, %s24
        %s242 = sld [smem:[#allocation2]]
        %s243 = sld [smem:[#allocation2 + $0x1]]
        %s244 = sld [smem:[#allocation2 + $0x2]]
        %v245 = vld [vmem:[%s238] sm:$0xff]
        %v246 = vstv %s242
        %v247 = vmul.f32 %v245, %v246
        %v248 = vround.ne.pseudo %v247
        %v249 = vstv %s243
        %v250 = vadd.f32 %v248, %v249
        %v251 = vmax.f32 %v250, -128.0
        %v252 = vmin.f32 %v251, 127.0
        %v253 = vld [vmem:[%s2] sm:$0xf]
        %v255 = vcombine.high %v252, %v252
        %v257 = vpack.c.bf16 %v252, %v252
        %v258 = vpack.c.bf16 %v255, %v255
        %vm259 = vcmask 31744
        %v261 = vsel %vm259, %v253, 0
        %vm263 = vcmask 1041408
        %v265 = vsel %vm263, %v257, 0
        %v268 = vsel %vm263, %v258, 0
        %270 = vmatprep.subr.bf16.mxu0 %v268
        %271 = vmatpush1.bf16.msra.mxu0 %v265
        %272 = vmatprep.subr.bf16.mxu0 0
        %273 = vmatpush1.bf16.msra.mxu0 0
        %274 = vmatprep.subr.bf16.mxu0 0
        %275 = vmatpush1.bf16.msra.mxu0 0
        %276 = vmatprep.subr.bf16.mxu0 0
        %277 = vmatpush1.bf16.msra.mxu0 0
        %278 = vmatprep.subr.bf16.mxu0 0
        %279 = vmatpush1.bf16.msra.mxu0 0
        %280 = vmatprep.subr.bf16.mxu0 0
        %281 = vmatpush1.bf16.msra.mxu0 0
        %282 = vmatprep.subr.bf16.mxu0 0
        %283 = vmatpush1.bf16.msra.mxu0 0
        %284 = vmatprep.subr.bf16.mxu0 0
        %285 = vmatpush1.bf16.msra.mxu0 0
        %286 = vmatprep.subr.bf16.mxu0 0
        %287 = vmatpush1.bf16.msra.mxu0 0
        %288 = vmatprep.subr.bf16.mxu0 0
        %289 = vmatpush1.bf16.msra.mxu0 0
        %290 = vmatprep.subr.bf16.mxu0 0
        %291 = vmatpush1.bf16.msra.mxu0 0
        %292 = vmatprep.subr.bf16.mxu0 0
        %293 = vmatpush1.bf16.msra.mxu0 0
        %294 = vmatprep.subr.bf16.mxu0 0
        %295 = vmatpush1.bf16.msra.mxu0 0
        %296 = vmatprep.subr.bf16.mxu0 0
        %297 = vmatpush1.bf16.msra.mxu0 0
        %298 = vmatprep.subr.bf16.mxu0 0
        %299 = vmatpush1.bf16.msra.mxu0 0
        %300 = vmatprep.subr.bf16.mxu0 0
        %301 = vmatpush1.bf16.msra.mxu0 0
        %302 = vmatprep.mubr.bf16.mxu0 0
        %303 = vmatmul.mubr.bf16.gmra.mrb[0].mxu0 %v261
        %v304 = vpop.f32.mrb[0].mxu0
        %v305 = vadd.f32 0.0, %v304
        %v306 = vpop.f32.mrb[0].mxu0
        %v307 = vadd.f32 0.0, %v306
        %v308 = vpop.f32.mrb[0].mxu0
        %v309 = vpop.f32.mrb[0].mxu0
        %310 = vdwg.mxu0
        %v311 = vstv %s244
        %v312 = vmul.f32 %v305, %v311
        %v313 = vmul.f32 %v307, %v311
        %v314 = vld [vmem:[%s3] sm:$0xff]
        %316 = vset.pattern.permute.xlu0 0
        %317 = vperm.xlu0 %316, %v314
        %v318 = vpop.permute.xlu0 %317
        %v320 = vadd.f32 %v312, %v318
        %v321 = vadd.f32 %v313, %v318
        %v322 = vmax.f32 %v320, 0.0
        %v323 = vmax.f32 %v321, 0.0
        %324 = vst [vmem:[%s229] sm:$0xff] %v322
        %325 = vst [vmem:[%s229 + $0x8] sm:$0xff] %v323
        %s326 = sand.u32 %s132, 1
        %s327 = scalar_lea.sflag [#allocation3], %s326
        %s328 = sand.u32 %s132, 1
        %s329 = smul.addr %s328, 16
        %s330 = scalar_lea.vmem [#allocation5], %s329
        // Predicated region
        $region41: #{tpu_custom_call.1} parent=35 // pred_check
          %p331 = pneg %p142
        $region42: #{tpu_custom_call.1} parent=35 // pred_check_branch
          %333 = sbr.rel (%p331) target = $region44
        $region43: #{tpu_custom_call.1} parent=35 // pred_region
          %s334 = smul.u32 2, %s24
          %s336 = ssub.s32 256, 256
          %337 = vsyncadd %s327, %s336
          %s338 = smul.addr %s23, 2
          %s339 = sadd.s32 %s334, %s338
          %s340 = smul.addr %s339, 128
          %s341 = scalar_lea.hbm %s4, %s340
          %s343 = sshll.u32 %s330, 4
          %s344 = int_to_ptr.vmem [resolvable:$true] %s343
          %346 = dma.vmem_to_hbm [thread:$0]  %s344, 256, %s341, %s327
        $region44: #{tpu_custom_call.1} parent=35 // pred_fallthru
          _
      $region36: #{tpu_custom_call.1} parent=5 // pred_fallthru
        _
      %p347 = scmp.le.s32.totalorder 2, %s14
      // Predicated region
      $region45: #{tpu_custom_call.1} parent=5 // pred_check
        %p348 = pneg %p347
      $region46: #{tpu_custom_call.1} parent=5 // pred_check_branch
        %350 = sbr.rel (%p348) target = $region48
      $region47: #{tpu_custom_call.1} parent=5 // pred_region
        %s351 = ssub.s32 %s14, 2
        // Predicated region
        $region49: #{tpu_custom_call.1} parent=47 // pred_check
          %p352 = pneg %p148
        $region50: #{tpu_custom_call.1} parent=47 // pred_check_branch
          %354 = sbr.rel (%p352) target = $region52
        $region51: #{tpu_custom_call.1} parent=47 // pred_region
          %s355 = sand.u32 %s133, 1
          %s356 = scalar_lea.sflag [#allocation3], %s355
          %s357 = sand.u32 %s133, 1
          %s358 = smul.addr %s357, 16
          %s359 = scalar_lea.vmem [#allocation5], %s358
          %360 = dma.done %s356, 256
        $region52: #{tpu_custom_call.1} parent=47 // pred_fallthru
          _
      $region48: #{tpu_custom_call.1} parent=5 // pred_fallthru
        _
    $region6: #{tpu_custom_call.1} parent=1 // loop_footer
      %s18 = sadd.s32 1, %s14
    $region7: #{tpu_custom_call.1} parent=1 // loop_footer_branch
      %13 = sbr.rel target = $region3
    $region8: #{tpu_custom_call.1} parent=1 // loop_exit
      _
    %361 = vsyncpa [#allocation3], 1
    %s362 = scalar_lea.sflag [#allocation3], 1
    %363 = vsyncpa %s362, 1
    %364 = vsyncpa [#allocation4], 1
    %s365 = scalar_lea.sflag [#allocation4], 1
    %366 = vsyncpa %s365, 1

</llo_original>
